<compile_context>
chip_gen: v7x
topology: tpu7x:2x2x1
jax: 0.10.0
libtpu: 0.0.40
codegen_flags: <defaults>
</compile_context>

<pallas_src>
import jax
import jax.numpy as jnp
from jax.experimental import pallas as pl
from jax.experimental.pallas import tpu as pltpu


def _round_up(x, m):
    return ((x + m - 1) // m) * m


def cbow_kernel(esum_ref,   # VMEM (1, D_pad) bf16       - summed context embedding (resident)
                wt_ref,     # VMEM (D_pad, TN) bf16      - streamed fc-weight tile
                b_ref,      # VMEM (1, TN) f32           - fc-bias tile (pad cols = -1e30)
                out_ref,    # VMEM (n_tiles, 1, TN) f32  - resident logits / log-probs
                m_ref,      # VMEM (1, 1) f32            - running max
                l_ref):     # VMEM (1, 1) f32            - running sum of exp
    j = pl.program_id(0)
    n_tiles = pl.num_programs(0)

    # ---- init the online-LSE carry on the first vocab tile ----
    @pl.when(j == 0)
    def _():
        m_ref[...] = jnp.full_like(m_ref, -jnp.inf)
        l_ref[...] = jnp.zeros_like(l_ref)

    # ---- per-tile GEMV: (1, D_pad) @ (D_pad, TN) on the MXU, f32 accumulate ----
    logits = jnp.dot(esum_ref[...], wt_ref[...],
                     preferred_element_type=jnp.float32) + b_ref[...]   # (1, TN) f32

    # ---- online logsumexp carried across vocab tiles ----
    m_prev = m_ref[...]
    m_new = jnp.maximum(m_prev, jnp.max(logits, axis=1, keepdims=True))
    l_ref[...] = (l_ref[...] * jnp.exp(m_prev - m_new)
                  + jnp.sum(jnp.exp(logits - m_new), axis=1, keepdims=True))
    m_ref[...] = m_new

    # Stash the raw logits for this tile in the resident output block.
    out_ref[j] = logits

    # ---- finalize: normalize all tiles once the full logsumexp is known ----
    @pl.when(j == n_tiles - 1)
    def _():
        lse = m_ref[...] + jnp.log(l_ref[...])        # (1, 1)
        out_ref[...] = out_ref[...] - lse
    # TODO(synk): logits stay (1, TN) (1/8 sublane density); the review's
    # (8, TN/8) column-interleave would densify VPU/EUP work but that work is
    # already hidden under the weight-stream DMA at this TN.


def prepare_cbow_params(embedding, fc_weight, fc_bias, *,
                        compute_dtype=jnp.bfloat16, tile_n=2048):
    """One-time parameter prep (NOT per forward): pad D/V to multiples of 128,
    transpose the fc weight once to [D_pad, V_pad], cast streamed weights to bf16."""
    V, D = embedding.shape
    D_pad = _round_up(D, 128)

    # VMEM budget for the double-buffered weight tile: keep it <= 16 MiB so the
    # whole working set fits the 32 MiB scoped VMEM default on every chip
    # (including v7x, whose physical VMEM is only 64 MiB).
    weight_tile_budget = 16 * 1024 * 1024
    tn_cap = max(128, (weight_tile_budget // (2 * D_pad * 2)) // 128 * 128)
    TN = min(_round_up(tile_n, 128), tn_cap, _round_up(V, 128))
    V_pad = _round_up(V, TN)

    emb_p = jnp.zeros((V, D_pad), compute_dtype).at[:, :D].set(
        embedding.astype(compute_dtype))
    wt_p = jnp.zeros((D_pad, V_pad), compute_dtype).at[:D, :V].set(
        fc_weight.T.astype(compute_dtype))
    # Padded vocab columns get a huge *finite* negative bias so they never
    # affect the softmax (finite, not -inf, to keep the online max NaN-free).
    b_p = jnp.full((1, V_pad), -1e30, jnp.float32).at[:, :V].set(
        fc_bias.astype(jnp.float32))
    meta = dict(V=V, D=D, V_pad=V_pad, D_pad=D_pad, TN=TN)
    return emb_p, wt_p, b_p, meta


def cbow_forward(indices, emb_p, wt_p, b_p, meta):
    """indices: int32 [C]; emb_p/wt_p/b_p/meta from prepare_cbow_params."""
    V, V_pad, D_pad, TN = meta["V"], meta["V_pad"], meta["D_pad"], meta["TN"]
    n_tiles = V_pad // TN
    compute_dtype = emb_p.dtype

    # Hoisted gather + sum (was a serial step-0 DMA chain inside the kernel).
    # f32 accumulate, then the same bf16 cast the streamed matmul uses anyway.
    esum = jnp.sum(jnp.take(emb_p, indices.astype(jnp.int32), axis=0)
                   .astype(jnp.float32), axis=0, keepdims=True).astype(compute_dtype)

    out = pl.pallas_call(
        cbow_kernel,
        out_shape=jax.ShapeDtypeStruct((n_tiles, 1, TN), jnp.float32),
        grid_spec=pltpu.PrefetchScalarGridSpec(
            num_scalar_prefetch=0,
            grid=(n_tiles,),
            in_specs=[
                pl.BlockSpec((1, D_pad), lambda j: (0, 0)),     # esum, resident
                pl.BlockSpec((D_pad, TN), lambda j: (0, j)),    # streamed weight tile
                pl.BlockSpec((1, TN), lambda j: (0, j)),        # bias tile
            ],
            # Constant output block index -> resident in VMEM across the grid.
            out_specs=pl.BlockSpec((n_tiles, 1, TN), lambda j: (0, 0, 0)),
            scratch_shapes=[
                pltpu.VMEM((1, 1), jnp.float32),   # running max
                pltpu.VMEM((1, 1), jnp.float32),   # running sum of exp
            ],
        ),
        compiler_params=pltpu.CompilerParams(
            # Vocab axis carries the LSE reduction + resident output -> arbitrary.
            # TODO(synk): a v7x 2-TC split would need a split-LSE combine epilogue.
            dimension_semantics=("arbitrary",),
            vmem_limit_bytes=32 * 1024 * 1024,
        ),
    )(esum, wt_p, b_p)

    # (n_tiles, 1, TN) is contiguous -> free reshape; drop padded vocab columns.
    return out.reshape(1, V_pad)[:, :V]


if __name__ == "__main__":
    VOCAB_SIZE = 1000     # exercises V padding (-> 1024)
    EMBED_DIM = 100       # exercises D padding (-> 128)
    CONTEXT = 8

    key = jax.random.PRNGKey(0)
    k_emb, k_w, k_b, k_idx = jax.random.split(key, 4)

    # Deterministic init matching the module's parameter shapes:
    #   nn.Embedding(vocab, dim) -> N(0, 1); nn.Linear(dim, vocab) -> U(+-1/sqrt(dim))
    embedding = jax.random.normal(k_emb, (VOCAB_SIZE, EMBED_DIM), dtype=jnp.float32)
    bound = 1.0 / jnp.sqrt(jnp.float32(EMBED_DIM))
    fc_weight = jax.random.uniform(k_w, (VOCAB_SIZE, EMBED_DIM),
                                   minval=-bound, maxval=bound, dtype=jnp.float32)
    fc_bias = jax.random.uniform(k_b, (VOCAB_SIZE,),
                                 minval=-bound, maxval=bound, dtype=jnp.float32)

    # Context word indices (the module's `inputs`).
    indices = jax.random.randint(k_idx, (CONTEXT,), 0, VOCAB_SIZE, dtype=jnp.int32)

    # One-time param prep (transpose + pad + bf16 cast).  tile_n=512 here only
    # to force 2 vocab tiles at this tiny demo vocab so the multi-tile online
    # logsumexp path is exercised; the production default is tile_n=2048.
    emb_p, wt_p, b_p, meta = prepare_cbow_params(embedding, fc_weight, fc_bias,
                                                 tile_n=512)
    log_probs = cbow_forward(indices, emb_p, wt_p, b_p, meta)
    jax.block_until_ready(log_probs)

    # Pure-JAX f32 reference of the module's forward semantics.
    ref_sum = embedding[indices].sum(axis=0).reshape(1, -1)
    ref_logits = ref_sum @ fc_weight.T + fc_bias
    ref_logp = ref_logits - jax.scipy.special.logsumexp(ref_logits, axis=1, keepdims=True)

    assert log_probs.shape == (1, VOCAB_SIZE)
    # bf16 weight stream with f32 accumulation: allow a small absolute tolerance.
    assert jnp.allclose(log_probs, ref_logp, atol=5e-2), "mismatch vs reference"

    print("KERNEL_OK")
</pallas_src>

<mosaic_0001>
module attributes {stable_mosaic.version = 11 : i64} {
  func.func @cbow_kernel(%arg0: i32, %arg1: memref<1x128xbf16, #tpu.memory_space<vmem>>, %arg2: memref<128x512xbf16, #tpu.memory_space<vmem>>, %arg3: memref<1x512xf32, #tpu.memory_space<vmem>>, %arg4: memref<2x1x512xf32, #tpu.memory_space<vmem>>, %arg5: memref<1x1xf32, #tpu.memory_space<vmem>>, %arg6: memref<1x1xf32, #tpu.memory_space<vmem>>) attributes {dimension_semantics = [#tpu.dimension_semantics<arbitrary>], iteration_bounds = array<i64: 2>, scalar_prefetch = 0 : i64, scratch_operands = 2 : i64, tpu.core_type = #tpu.core_type<tc>, window_params = [{pipeline_mode = #tpu.pipeline_mode<synchronous>, transform_indices = @transform_0, window_bounds = array<i64: 1, 128>}, {transform_indices = @transform_1, window_bounds = array<i64: 128, 512>}, {transform_indices = @transform_2, window_bounds = array<i64: 1, 512>}, {pipeline_mode = #tpu.pipeline_mode<synchronous>, transform_indices = @transform_3, window_bounds = array<i64: 2, 1, 512>}]} {
    %c0_i32 = arith.constant 0 : i32
    %0 = arith.cmpi eq, %arg0, %c0_i32 : i32
    %1 = arith.extui %0 : i1 to i32
    %c0_i32_0 = arith.constant 0 : i32
    %2 = arith.cmpi ne, %1, %c0_i32_0 : i32
    scf.if %2 {
      %cst_19 = arith.constant 0xFF800000 : f32
      %31 = vector.broadcast %cst_19 : f32 to vector<1x1xf32>
      %c0_20 = arith.constant 0 : index
      %c0_21 = arith.constant 0 : index
      %32 = vector.load %arg5[%c0_20, %c0_21] : memref<1x1xf32, #tpu.memory_space<vmem>>, vector<1x1xf32>
      tpu.vector_store %arg5[%c0_20, %c0_21], %31 {strides = array<i32>} : memref<1x1xf32, #tpu.memory_space<vmem>>, vector<1x1xf32>,
      %cst_22 = arith.constant 0.000000e+00 : f32
      %33 = vector.broadcast %cst_22 : f32 to vector<1x1xf32>
      %c0_23 = arith.constant 0 : index
      %c0_24 = arith.constant 0 : index
      %34 = vector.load %arg6[%c0_23, %c0_24] : memref<1x1xf32, #tpu.memory_space<vmem>>, vector<1x1xf32>
      tpu.vector_store %arg6[%c0_23, %c0_24], %33 {strides = array<i32>} : memref<1x1xf32, #tpu.memory_space<vmem>>, vector<1x1xf32>,
    } else {
    }
    %c0 = arith.constant 0 : index
    %c0_1 = arith.constant 0 : index
    %3 = vector.load %arg1[%c0, %c0_1] : memref<1x128xbf16, #tpu.memory_space<vmem>>, vector<1x128xbf16>
    %c0_2 = arith.constant 0 : index
    %c0_3 = arith.constant 0 : index
    %4 = vector.load %arg2[%c0_2, %c0_3] : memref<128x512xbf16, #tpu.memory_space<vmem>>, vector<128x512xbf16>
    %cst = arith.constant dense<0.000000e+00> : vector<1x512xf32>
    %5 = tpu.matmul %3, %4, %cst {dimension_numbers = #tpu.dot_dimension_numbers<[1], [0], [0], [1], [0, 0, 1, 1], [], []>} : vector<1x128xbf16>, vector<128x512xbf16>, vector<1x512xf32> -> vector<1x512xf32>
    %c0_4 = arith.constant 0 : index
    %c0_5 = arith.constant 0 : index
    %6 = vector.load %arg3[%c0_4, %c0_5] : memref<1x512xf32, #tpu.memory_space<vmem>>, vector<1x512xf32>
    %7 = arith.addf %5, %6 : vector<1x512xf32>
    %c0_6 = arith.constant 0 : index
    %c0_7 = arith.constant 0 : index
    %8 = vector.load %arg5[%c0_6, %c0_7] : memref<1x1xf32, #tpu.memory_space<vmem>>, vector<1x1xf32>
    %cst_8 = arith.constant dense<0xFF800000> : vector<1xf32>
    %9 = vector.multi_reduction <maximumf>, %7, %cst_8 [1] : vector<1x512xf32> to vector<1xf32>
    %10 = vector.shape_cast %9 : vector<1xf32> to vector<1x1xf32>
    %11 = arith.maximumf %8, %10 : vector<1x1xf32>
    %c0_9 = arith.constant 0 : index
    %c0_10 = arith.constant 0 : index
    %12 = vector.load %arg6[%c0_9, %c0_10] : memref<1x1xf32, #tpu.memory_space<vmem>>, vector<1x1xf32>
    %13 = arith.subf %8, %11 : vector<1x1xf32>
    %14 = math.exp %13 : vector<1x1xf32>
    %15 = arith.mulf %12, %14 : vector<1x1xf32>
    %16 = vector.broadcast %11 : vector<1x1xf32> to vector<1x512xf32>
    %17 = arith.subf %7, %16 : vector<1x512xf32>
    %18 = math.exp %17 : vector<1x512xf32>
    %cst_11 = arith.constant dense<0.000000e+00> : vector<1xf32>
    %19 = vector.multi_reduction <add>, %18, %cst_11 [1] : vector<1x512xf32> to vector<1xf32>
    %20 = vector.shape_cast %19 : vector<1xf32> to vector<1x1xf32>
    %21 = arith.addf %15, %20 : vector<1x1xf32>
    %c0_12 = arith.constant 0 : index
    %c0_13 = arith.constant 0 : index
    %22 = vector.load %arg6[%c0_12, %c0_13] : memref<1x1xf32, #tpu.memory_space<vmem>>, vector<1x1xf32>
    tpu.vector_store %arg6[%c0_12, %c0_13], %21 {strides = array<i32>} : memref<1x1xf32, #tpu.memory_space<vmem>>, vector<1x1xf32>,
    %c0_14 = arith.constant 0 : index
    %c0_15 = arith.constant 0 : index
    %23 = vector.load %arg5[%c0_14, %c0_15] : memref<1x1xf32, #tpu.memory_space<vmem>>, vector<1x1xf32>
    tpu.vector_store %arg5[%c0_14, %c0_15], %11 {strides = array<i32>} : memref<1x1xf32, #tpu.memory_space<vmem>>, vector<1x1xf32>,
    %24 = arith.index_cast %arg0 : i32 to index
    %c0_16 = arith.constant 0 : index
    %c0_17 = arith.constant 0 : index
    %25 = vector.load %arg4[%24, %c0_16, %c0_17] : memref<2x1x512xf32, #tpu.memory_space<vmem>>, vector<1x1x512xf32>
    %26 = vector.shape_cast %25 : vector<1x1x512xf32> to vector<1x512xf32>
    %27 = vector.shape_cast %7 : vector<1x512xf32> to vector<1x1x512xf32>
    tpu.vector_store %arg4[%24, %c0_16, %c0_17], %27 {strides = array<i32>} : memref<2x1x512xf32, #tpu.memory_space<vmem>>, vector<1x1x512xf32>,
    %c1_i32 = arith.constant 1 : i32
    %28 = arith.cmpi eq, %arg0, %c1_i32 : i32
    %29 = arith.extui %28 : i1 to i32
    %c0_i32_18 = arith.constant 0 : i32
    %30 = arith.cmpi ne, %29, %c0_i32_18 : i32
    scf.if %30 {
      %c0_19 = arith.constant 0 : index
      %c0_20 = arith.constant 0 : index
      %31 = vector.load %arg5[%c0_19, %c0_20] : memref<1x1xf32, #tpu.memory_space<vmem>>, vector<1x1xf32>
      %c0_21 = arith.constant 0 : index
      %c0_22 = arith.constant 0 : index
      %32 = vector.load %arg6[%c0_21, %c0_22] : memref<1x1xf32, #tpu.memory_space<vmem>>, vector<1x1xf32>
      %33 = math.log %32 : vector<1x1xf32>
      %34 = arith.addf %31, %33 : vector<1x1xf32>
      %c0_23 = arith.constant 0 : index
      %c0_24 = arith.constant 0 : index
      %c0_25 = arith.constant 0 : index
      %35 = vector.load %arg4[%c0_23, %c0_24, %c0_25] : memref<2x1x512xf32, #tpu.memory_space<vmem>>, vector<2x1x512xf32>
      %36 = vector.shape_cast %34 : vector<1x1xf32> to vector<1x1x1xf32>
      %37 = vector.broadcast %36 : vector<1x1x1xf32> to vector<2x1x512xf32>
      %38 = arith.subf %35, %37 : vector<2x1x512xf32>
      %c0_26 = arith.constant 0 : index
      %c0_27 = arith.constant 0 : index
      %c0_28 = arith.constant 0 : index
      %39 = vector.load %arg4[%c0_26, %c0_27, %c0_28] : memref<2x1x512xf32, #tpu.memory_space<vmem>>, vector<2x1x512xf32>
      tpu.vector_store %arg4[%c0_26, %c0_27, %c0_28], %38 {strides = array<i32>} : memref<2x1x512xf32, #tpu.memory_space<vmem>>, vector<2x1x512xf32>,
    } else {
    }
    return
  }
  func.func @transform_0(%arg0: i32) -> (i32, i32) {
    %c0_i32 = arith.constant 0 : i32
    %c0_i32_0 = arith.constant 0 : i32
    %c0_i32_1 = arith.constant 0 : i32
    return %c0_i32, %c0_i32_0 : i32, i32
  }
  func.func @transform_1(%arg0: i32) -> (i32, i32) {
    %c0_i32 = arith.constant 0 : i32
    %c0_i32_0 = arith.constant 0 : i32
    return %c0_i32, %arg0 : i32, i32
  }
  func.func @transform_2(%arg0: i32) -> (i32, i32) {
    %c0_i32 = arith.constant 0 : i32
    %c0_i32_0 = arith.constant 0 : i32
    return %c0_i32, %arg0 : i32, i32
  }
  func.func @transform_3(%arg0: i32) -> (i32, i32, i32) {
    %c0_i32 = arith.constant 0 : i32
    %c0_i32_0 = arith.constant 0 : i32
    %c0_i32_1 = arith.constant 0 : i32
    %c0_i32_2 = arith.constant 0 : i32
    return %c0_i32, %c0_i32_0, %c0_i32_1 : i32, i32, i32
  }
}

</mosaic_0001>

<llo_original>
// kernel: tpu_custom_call.1
$region0: #{tpu_custom_call.1}
  #allocation0 [shape = 'u32[]', space=smem, size = 0x4, offset = 0x4, fixed_abs, tag = 'smem constant byte address 0x4 - core index']
  #allocation1 [shape = 'u32[144,128]{1,0:T(1,128)}', space=vmem, size = 0x12000, scoped, tag = 'internal scratch']
  #allocation2 [shape = 'f32[1,1]{1,0:T(1,128)}', space=vmem, size = 0x200, scoped, tag = 'scratch operand']
  #allocation3 [shape = 'f32[1,1]{1,0:T(1,128)}', space=vmem, size = 0x200, scoped, tag = 'scratch operand']
  %s0 = inlined_call_operand.hbm [shape: bf16[1,128], index: 0, kind: input, shape index: {}]
  %s1 = inlined_call_operand.hbm [shape: bf16[128,1024], index: 1, kind: input, shape index: {}]
  %s2 = inlined_call_operand.hbm [shape: f32[1,1024], index: 2, kind: input, shape index: {}]
  %s3 = inlined_call_operand.hbm [shape: f32[2,1,512], index: 3, kind: output, shape index: {}]
  %s4 = sld [smem:[#allocation0]]
  $region65: #{tpu_custom_call.1} parent=0
    _
  %s6 = ssub.s32 1, %s4
  %s7 = scalar_select 0, %s6, %s4
  $region1: #{tpu_custom_call.1} parent=0
    #allocation4 [shape = 'u8[512]{0}', space=vmem, size = 0x400, scoped, tag = 'input window, operand 0, single buffered']
    #allocation5 [shape = 's32[2]{0}', space=sflag, size = 0x8, scoped, tag = 'scoped memory for tpu_custom_call.1']
    #allocation6 [shape = 's32[2]{0}', space=sflag, size = 0x8, scoped, tag = 'scoped memory for tpu_custom_call.1']
    #allocation7 [shape = 'u8[262144]{0}', space=vmem, size = 0x40000, scoped, tag = 'input window, operand 1']
    #allocation8 [shape = 's32[2]{0}', space=sflag, size = 0x8, scoped, tag = 'scoped memory for tpu_custom_call.1']
    #allocation9 [shape = 'u8[4096]{0}', space=vmem, size = 0x1000, scoped, tag = 'input window, operand 2']
    #allocation10 [shape = 'u8[4096]{0}', space=vmem, size = 0x1000, scoped, tag = 'output window, operand 0, single buffered']
    %8 = vsyncpa [#allocation5], 0
    %9 = vsyncpa [#allocation8], 0
    %s10 = scalar_lea.sflag [#allocation8], 1
    %11 = vsyncpa %s10, 0
    %12 = vsyncpa [#allocation6], 0
    loop: start=0, step=1, limit=4
    $region2: #{tpu_custom_call.1} parent=1 // loop_pre_header
      _
    $region3: #{tpu_custom_call.1} parent=1 // loop_header
      %s14 = sphi 0, %s18
      %p15 = scmp.ge.s32.totalorder %s14, 4
      %s22 = sphi 0, %s22
      %s24 = sphi 0, %s22
      %s25 = sphi 0, %s24
      %s39 = sphi 0, %s25
      %s45 = sphi 0, %s47
      %s48 = sphi 0, %s45
      %s49 = sphi 0, %s48
      %s65 = sphi 0, %s49
      %s71 = sphi 0, %s73
      %s74 = sphi 0, %s71
      %s75 = sphi 0, %s74
      %s91 = sphi 0, %s75
      %s95 = sphi 0, %s95
      %s97 = sphi 0, %s95
      %s98 = sphi 0, %s97
      %s112 = sphi 0, %s98
    $region4: #{tpu_custom_call.1} parent=1 // loop_header_branch
      %17 = sbr.rel (%p15) target = $region8
    $region5: #{tpu_custom_call.1} parent=1 // loop_body
      %s19 = ssub.s32 %s14, 1
      %s20 = ssub.s32 %s14, 2
      %s21 = sadd.s32 %s14, 1
      %s23 = sadd.s32 %s22, 1
      %p26 = scmp.eq.s32.totalorder %s14, 1
      %p27 = scmp.ne.s32.totalorder %s22, %s24
      %p28 = scmp.eq.s32.totalorder %s14, 0
      %p29 = por %p27, %p28
      %p30 = scmp.ne.s32.totalorder %s22, %s24
      %p31 = scmp.eq.s32.totalorder %s19, 1
      %p32 = por %p30, %p31
      %p33 = scmp.ne.s32.totalorder %s24, %s25
      %p34 = scmp.eq.s32.totalorder %s19, 0
      %p35 = por %p33, %p34
      %p36 = scmp.ne.s32.totalorder %s24, %s25
      %p37 = scmp.eq.s32.totalorder %s20, 1
      %p38 = por %p36, %p37
      %p40 = scmp.ne.s32.totalorder %s25, %s39
      %p41 = scmp.eq.s32.totalorder %s20, 0
      %p42 = por %p40, %p41
      %s43 = ssub.s32 %s14, %s21
      %p44 = scmp.eq.s32.totalorder %s43, 0
      %s46 = sadd.s32 %s45, 1
      %s47 = scalar_select %p44, %s45, %s46
      %p50 = pneg %p44
      %p51 = scmp.eq.s32.totalorder %s14, 1
      %p52 = por %p50, %p51
      %p53 = scmp.ne.s32.totalorder %s45, %s48
      %p54 = scmp.eq.s32.totalorder %s14, 0
      %p55 = por %p53, %p54
      %p56 = scmp.ne.s32.totalorder %s45, %s48
      %p57 = scmp.eq.s32.totalorder %s19, 1
      %p58 = por %p56, %p57
      %p59 = scmp.ne.s32.totalorder %s48, %s49
      %p60 = scmp.eq.s32.totalorder %s19, 0
      %p61 = por %p59, %p60
      %p62 = scmp.ne.s32.totalorder %s48, %s49
      %p63 = scmp.eq.s32.totalorder %s20, 1
      %p64 = por %p62, %p63
      %p66 = scmp.ne.s32.totalorder %s49, %s65
      %p67 = scmp.eq.s32.totalorder %s20, 0
      %p68 = por %p66, %p67
      %s69 = ssub.s32 %s14, %s21
      %p70 = scmp.eq.s32.totalorder %s69, 0
      %s72 = sadd.s32 %s71, 1
      %s73 = scalar_select %p70, %s71, %s72
      %p76 = pneg %p70
      %p77 = scmp.eq.s32.totalorder %s14, 1
      %p78 = por %p76, %p77
      %p79 = scmp.ne.s32.totalorder %s71, %s74
      %p80 = scmp.eq.s32.totalorder %s14, 0
      %p81 = por %p79, %p80
      %p82 = scmp.ne.s32.totalorder %s71, %s74
      %p83 = scmp.eq.s32.totalorder %s19, 1
      %p84 = por %p82, %p83
      %p85 = scmp.ne.s32.totalorder %s74, %s75
      %p86 = scmp.eq.s32.totalorder %s19, 0
      %p87 = por %p85, %p86
      %p88 = scmp.ne.s32.totalorder %s74, %s75
      %p89 = scmp.eq.s32.totalorder %s20, 1
      %p90 = por %p88, %p89
      %p92 = scmp.ne.s32.totalorder %s75, %s91
      %p93 = scmp.eq.s32.totalorder %s20, 0
      %p94 = por %p92, %p93
      %s96 = sadd.s32 %s95, 1
      %p99 = scmp.eq.s32.totalorder %s14, 1
      %p100 = scmp.ne.s32.totalorder %s95, %s97
      %p101 = scmp.eq.s32.totalorder %s14, 0
      %p102 = por %p100, %p101
      %p103 = scmp.ne.s32.totalorder %s95, %s97
      %p104 = scmp.eq.s32.totalorder %s19, 1
      %p105 = por %p103, %p104
      %p106 = scmp.ne.s32.totalorder %s97, %s98
      %p107 = scmp.eq.s32.totalorder %s19, 0
      %p108 = por %p106, %p107
      %p109 = scmp.ne.s32.totalorder %s97, %s98
      %p110 = scmp.eq.s32.totalorder %s20, 1
      %p111 = por %p109, %p110
      %p113 = scmp.ne.s32.totalorder %s98, %s112
      %p114 = scmp.eq.s32.totalorder %s20, 0
      %p115 = por %p113, %p114
      %p116 = scmp.le.s32.totalorder 1, %s14
      %p117 = scmp.lt.s32.totalorder %s14, 3
      %p118 = pnand %p116, %p117
      %p119 = pneg %p118
      // Predicated region
      $region9: #{tpu_custom_call.1} parent=5 // pred_check
        _
      $region10: #{tpu_custom_call.1} parent=5 // pred_check_branch
        %121 = sbr.rel (%p118) target = $region12
      $region11: #{tpu_custom_call.1} parent=5 // pred_region
        %s122 = ssub.s32 %s14, 1
        // Predicated region
        $region13: #{tpu_custom_call.1} parent=11 // pred_check
          %p123 = pneg %p35
        $region14: #{tpu_custom_call.1} parent=11 // pred_check_branch
          %125 = sbr.rel (%p123) target = $region16
        $region15: #{tpu_custom_call.1} parent=11 // pred_region
          %s127 = ssub.s32 16, 16
          %128 = vsyncadd [#allocation5], %s127
          %s130 = sshll.u32 [#allocation4], 4
          %s131 = int_to_ptr.vmem [resolvable:$true] %s130
          %133 = dma.hbm_to_vmem [thread:$0]  %s0, 16, %s131, [#allocation5]
        $region16: #{tpu_custom_call.1} parent=11 // pred_fallthru
          _
      $region12: #{tpu_custom_call.1} parent=5 // pred_fallthru
        _
      %p134 = scmp.lt.s32.totalorder %s14, 2
      // Predicated region
      $region17: #{tpu_custom_call.1} parent=5 // pred_check
        %p135 = pneg %p134
      $region18: #{tpu_custom_call.1} parent=5 // pred_check_branch
        %137 = sbr.rel (%p135) target = $region20
      $region19: #{tpu_custom_call.1} parent=5 // pred_region
        // Predicated region
        $region21: #{tpu_custom_call.1} parent=19 // pred_check
          %p138 = pneg %p55
        $region22: #{tpu_custom_call.1} parent=19 // pred_check_branch
          %140 = sbr.rel (%p138) target = $region24
        $region23: #{tpu_custom_call.1} parent=19 // pred_region
          %s141 = sand.u32 %s14, 1
          %s142 = scalar_lea.sflag [#allocation8], %s141
          %s143 = sand.u32 %s45, 1
          %s144 = smul.addr %s143, 256
          %s145 = scalar_lea.vmem [#allocation7], %s144
          %s146 = smul.u32 4, %s14
          %s148 = ssub.s32 4096, 4096
          %149 = vsyncadd %s142, %s148
          %s150 = smul.addr %s146, 64
          %s151 = scalar_lea.hbm %s1, %s150
          %s152 = sshll.u32 %s145, 4
          %s153 = int_to_ptr.vmem [resolvable:$true] %s152
          %158 = dma.hbm_to_vmem [thread:$0]  %s151, 4096, %s153, %s142, 512, 256, 16
        $region24: #{tpu_custom_call.1} parent=19 // pred_fallthru
          _
        // Predicated region
        $region25: #{tpu_custom_call.1} parent=19 // pred_check
          %p159 = pneg %p81
        $region26: #{tpu_custom_call.1} parent=19 // pred_check_branch
          %161 = sbr.rel (%p159) target = $region28
        $region27: #{tpu_custom_call.1} parent=19 // pred_region
          %s162 = sand.u32 %s14, 1
          %s163 = scalar_lea.sflag [#allocation8], %s162
          %s164 = sand.u32 %s71, 1
          %s165 = smul.addr %s164, 4
          %s166 = scalar_lea.vmem [#allocation9], %s165
          %s167 = smul.u32 4, %s14
          %s169 = ssub.s32 64, 64
          %170 = vsyncadd %s163, %s169
          %s171 = smul.addr %s167, 16
          %s172 = scalar_lea.hbm %s2, %s171
          %s174 = sshll.u32 %s166, 4
          %s175 = int_to_ptr.vmem [resolvable:$true] %s174
          %177 = dma.hbm_to_vmem [thread:$0]  %s172, 64, %s175, %s163
        $region28: #{tpu_custom_call.1} parent=19 // pred_fallthru
          _
      $region20: #{tpu_custom_call.1} parent=5 // pred_fallthru
        _
      %p178 = scmp.le.s32.totalorder 1, %s14
      %p179 = scmp.lt.s32.totalorder %s14, 3
      %p180 = pnand %p178, %p179
      %p181 = pneg %p180
      // Predicated region
      $region29: #{tpu_custom_call.1} parent=5 // pred_check
        _
      $region30: #{tpu_custom_call.1} parent=5 // pred_check_branch
        %183 = sbr.rel (%p180) target = $region32
      $region31: #{tpu_custom_call.1} parent=5 // pred_region
        %s184 = ssub.s32 %s14, 1
        // Predicated region
        $region33: #{tpu_custom_call.1} parent=31 // pred_check
          %p185 = pneg %p35
        $region34: #{tpu_custom_call.1} parent=31 // pred_check_branch
          %187 = sbr.rel (%p185) target = $region36
        $region35: #{tpu_custom_call.1} parent=31 // pred_region
          %188 = dma.done [#allocation5], 16
        $region36: #{tpu_custom_call.1} parent=31 // pred_fallthru
          _
        %s189 = sand.u32 %s19, 1
        %s190 = scalar_lea.sflag [#allocation8], %s189
        %s191 = sand.u32 %s48, 1
        %s192 = smul.addr %s191, 256
        %s193 = scalar_lea.vmem [#allocation7], %s192
        // Predicated region
        $region37: #{tpu_custom_call.1} parent=31 // pred_check
          %p194 = pneg %p61
        $region38: #{tpu_custom_call.1} parent=31 // pred_check_branch
          %196 = sbr.rel (%p194) target = $region40
        $region39: #{tpu_custom_call.1} parent=31 // pred_region
          %197 = dma.done %s190, 4096
        $region40: #{tpu_custom_call.1} parent=31 // pred_fallthru
          _
        %s198 = sand.u32 %s19, 1
        %s199 = scalar_lea.sflag [#allocation8], %s198
        %s200 = sand.u32 %s74, 1
        %s201 = smul.addr %s200, 4
        %s202 = scalar_lea.vmem [#allocation9], %s201
        // Predicated region
        $region41: #{tpu_custom_call.1} parent=31 // pred_check
          %p203 = pneg %p87
        $region42: #{tpu_custom_call.1} parent=31 // pred_check_branch
          %205 = sbr.rel (%p203) target = $region44
        $region43: #{tpu_custom_call.1} parent=31 // pred_region
          %206 = dma.done %s199, 64
        $region44: #{tpu_custom_call.1} parent=31 // pred_fallthru
          _
        %p207 = pneg %p35
        %p208 = pneg %p32
        %s209 = sand.u32 %s19, 1
        %s210 = scalar_lea.sflag [#allocation8], %s209
        %s211 = sand.u32 %s48, 1
        %s212 = smul.addr %s211, 256
        %s213 = scalar_lea.vmem [#allocation7], %s212
        %p214 = pneg %p61
        %p215 = pneg %p58
        %s216 = sand.u32 %s19, 1
        %s217 = scalar_lea.sflag [#allocation8], %s216
        %s218 = sand.u32 %s74, 1
        %s219 = smul.addr %s218, 4
        %s220 = scalar_lea.vmem [#allocation9], %s219
        %p221 = pneg %p87
        %p222 = pneg %p84
        %p223 = pneg %p108
        %p224 = pneg %p105
        %s225 = smul.u32 4, %s19
        %s226 = smul.u32 4, %s19
        %p228 = scmp.eq.s32.totalorder %s19, 0
        // Predicated region
        $region45: #{tpu_custom_call.1} parent=31 // pred_check
          %p229 = pneg %p228
        $region46: #{tpu_custom_call.1} parent=31 // pred_check_branch
          %231 = sbr.rel (%p229) target = $region48
        $region47: #{tpu_custom_call.1} parent=31 // pred_region
          %vm232 = vcmask 0
          %233 = vst.msk [vmem:[#allocation2] sm:$0x1] %vm232, -inf
          %234 = vst.msk [vmem:[#allocation3] sm:$0x1] %vm232, 0.0
        $region48: #{tpu_custom_call.1} parent=31 // pred_fallthru
          _
        %v235 = vld [vmem:[#allocation4] sm:$0x1]
        %v236 = vld [vmem:[%s193] sm:$0xff]
        %v237 = vld [vmem:[%s193 + $0x8] sm:$0xff]
        %v238 = vld [vmem:[%s193 + $0x10] sm:$0xff]
        %v239 = vld [vmem:[%s193 + $0x18] sm:$0xff]
        %v240 = vld [vmem:[%s193 + $0x20] sm:$0xff]
        %v241 = vld [vmem:[%s193 + $0x28] sm:$0xff]
        %v242 = vld [vmem:[%s193 + $0x30] sm:$0xff]
        %v243 = vld [vmem:[%s193 + $0x38] sm:$0xff]
        %v244 = vld [vmem:[%s193 + $0x40] sm:$0xff]
        %v245 = vld [vmem:[%s193 + $0x48] sm:$0xff]
        %v246 = vld [vmem:[%s193 + $0x50] sm:$0xff]
        %v247 = vld [vmem:[%s193 + $0x58] sm:$0xff]
        %v248 = vld [vmem:[%s193 + $0x60] sm:$0xff]
        %v249 = vld [vmem:[%s193 + $0x68] sm:$0xff]
        %v250 = vld [vmem:[%s193 + $0x70] sm:$0xff]
        %v251 = vld [vmem:[%s193 + $0x78] sm:$0xff]
        %v252 = vld [vmem:[%s193 + $0x80] sm:$0xff]
        %v253 = vld [vmem:[%s193 + $0x88] sm:$0xff]
        %v254 = vld [vmem:[%s193 + $0x90] sm:$0xff]
        %v255 = vld [vmem:[%s193 + $0x98] sm:$0xff]
        %v256 = vld [vmem:[%s193 + $0xa0] sm:$0xff]
        %v257 = vld [vmem:[%s193 + $0xa8] sm:$0xff]
        %v258 = vld [vmem:[%s193 + $0xb0] sm:$0xff]
        %v259 = vld [vmem:[%s193 + $0xb8] sm:$0xff]
        %v260 = vld [vmem:[%s193 + $0xc0] sm:$0xff]
        %v261 = vld [vmem:[%s193 + $0xc8] sm:$0xff]
        %v262 = vld [vmem:[%s193 + $0xd0] sm:$0xff]
        %v263 = vld [vmem:[%s193 + $0xd8] sm:$0xff]
        %v264 = vld [vmem:[%s193 + $0xe0] sm:$0xff]
        %v265 = vld [vmem:[%s193 + $0xe8] sm:$0xff]
        %v266 = vld [vmem:[%s193 + $0xf0] sm:$0xff]
        %v267 = vld [vmem:[%s193 + $0xf8] sm:$0xff]
        %v268 = vld [vmem:[%s202] sm:$0xf]
        %v301 = vunpack.c.l.b16 %v236
        %v302 = vunpack.c.h.b16 %v236
        %v303 = vunpack.c.l.b16 %v237
        %v304 = vunpack.c.h.b16 %v237
        %v305 = vunpack.c.l.b16 %v238
        %v306 = vunpack.c.h.b16 %v238
        %v307 = vunpack.c.l.b16 %v239
        %v308 = vunpack.c.h.b16 %v239
        %v309 = vunpack.c.l.b16 %v240
        %v310 = vunpack.c.h.b16 %v240
        %v311 = vunpack.c.l.b16 %v241
        %v312 = vunpack.c.h.b16 %v241
        %v313 = vunpack.c.l.b16 %v242
        %v314 = vunpack.c.h.b16 %v242
        %v315 = vunpack.c.l.b16 %v243
        %v316 = vunpack.c.h.b16 %v243
        %v317 = vunpack.c.l.b16 %v244
        %v318 = vunpack.c.h.b16 %v244
        %v319 = vunpack.c.l.b16 %v245
        %v320 = vunpack.c.h.b16 %v245
        %v321 = vunpack.c.l.b16 %v246
        %v322 = vunpack.c.h.b16 %v246
        %v323 = vunpack.c.l.b16 %v247
        %v324 = vunpack.c.h.b16 %v247
        %v325 = vunpack.c.l.b16 %v248
        %v326 = vunpack.c.h.b16 %v248
        %v327 = vunpack.c.l.b16 %v249
        %v328 = vunpack.c.h.b16 %v249
        %v329 = vunpack.c.l.b16 %v250
        %v330 = vunpack.c.h.b16 %v250
        %v331 = vunpack.c.l.b16 %v251
        %v332 = vunpack.c.h.b16 %v251
        %v333 = vunpack.c.l.b16 %v252
        %v334 = vunpack.c.h.b16 %v252
        %v335 = vunpack.c.l.b16 %v253
        %v336 = vunpack.c.h.b16 %v253
        %v337 = vunpack.c.l.b16 %v254
        %v338 = vunpack.c.h.b16 %v254
        %v339 = vunpack.c.l.b16 %v255
        %v340 = vunpack.c.h.b16 %v255
        %v341 = vunpack.c.l.b16 %v256
        %v342 = vunpack.c.h.b16 %v256
        %v343 = vunpack.c.l.b16 %v257
        %v344 = vunpack.c.h.b16 %v257
        %v345 = vunpack.c.l.b16 %v258
        %v346 = vunpack.c.h.b16 %v258
        %v347 = vunpack.c.l.b16 %v259
        %v348 = vunpack.c.h.b16 %v259
        %v349 = vunpack.c.l.b16 %v260
        %v350 = vunpack.c.h.b16 %v260
        %v351 = vunpack.c.l.b16 %v261
        %v352 = vunpack.c.h.b16 %v261
        %v353 = vunpack.c.l.b16 %v262
        %v354 = vunpack.c.h.b16 %v262
        %v355 = vunpack.c.l.b16 %v263
        %v356 = vunpack.c.h.b16 %v263
        %v357 = vunpack.c.l.b16 %v264
        %v358 = vunpack.c.h.b16 %v264
        %v359 = vunpack.c.l.b16 %v265
        %v360 = vunpack.c.h.b16 %v265
        %v361 = vunpack.c.l.b16 %v266
        %v362 = vunpack.c.h.b16 %v266
        %v363 = vunpack.c.l.b16 %v267
        %v364 = vunpack.c.h.b16 %v267
        %v365 = vpack.c.b16 %v305, %v301
        %v366 = vpack.c.b16 %v306, %v302
        %v367 = vpack.c.b16 %v307, %v303
        %v368 = vpack.c.b16 %v308, %v304
        %v369 = vpack.c.b16 %v313, %v309
        %v370 = vpack.c.b16 %v314, %v310
        %v371 = vpack.c.b16 %v315, %v311
        %v372 = vpack.c.b16 %v316, %v312
        %v373 = vpack.c.b16 %v321, %v317
        %v374 = vpack.c.b16 %v322, %v318
        %v375 = vpack.c.b16 %v323, %v319
        %v376 = vpack.c.b16 %v324, %v320
        %v377 = vpack.c.b16 %v329, %v325
        %v378 = vpack.c.b16 %v330, %v326
        %v379 = vpack.c.b16 %v331, %v327
        %v380 = vpack.c.b16 %v332, %v328
        %v381 = vpack.c.b16 %v337, %v333
        %v382 = vpack.c.b16 %v338, %v334
        %v383 = vpack.c.b16 %v339, %v335
        %v384 = vpack.c.b16 %v340, %v336
        %v385 = vpack.c.b16 %v345, %v341
        %v386 = vpack.c.b16 %v346, %v342
        %v387 = vpack.c.b16 %v347, %v343
        %v388 = vpack.c.b16 %v348, %v344
        %v389 = vpack.c.b16 %v353, %v349
        %v390 = vpack.c.b16 %v354, %v350
        %v391 = vpack.c.b16 %v355, %v351
        %v392 = vpack.c.b16 %v356, %v352
        %v393 = vpack.c.b16 %v361, %v357
        %v394 = vpack.c.b16 %v362, %v358
        %v395 = vpack.c.b16 %v363, %v359
        %v396 = vpack.c.b16 %v364, %v360
        %v430 = vlaneseq
        %v431 = vshrl.u32 %v430, 7
        %v432 = vsub.s32 0, %v431
        %v433 = vrot.slane %v268, %v432
        %v434 = vlaneseq
        %v435 = vshrl.u32 %v434, 7
        %v436 = vsub.s32 1, %v435
        %v437 = vrot.slane %v268, %v436
        %v438 = vlaneseq
        %v439 = vshrl.u32 %v438, 7
        %v440 = vsub.s32 2, %v439
        %v441 = vrot.slane %v268, %v440
        %v442 = vlaneseq
        %v443 = vshrl.u32 %v442, 7
        %v444 = vsub.s32 3, %v443
        %v445 = vrot.slane %v268, %v444
        %450 = vmatprep.subr.bf16.mxu0 %v366
        %451 = vmatpush1.bf16.msra.mxu0 %v365
        %452 = vmatprep.subr.bf16.mxu0 %v370
        %453 = vmatpush1.bf16.msra.mxu0 %v369
        %454 = vmatprep.subr.bf16.mxu0 %v374
        %455 = vmatpush1.bf16.msra.mxu0 %v373
        %456 = vmatprep.subr.bf16.mxu0 %v378
        %457 = vmatpush1.bf16.msra.mxu0 %v377
        %458 = vmatprep.subr.bf16.mxu0 %v382
        %459 = vmatpush1.bf16.msra.mxu0 %v381
        %460 = vmatprep.subr.bf16.mxu0 %v386
        %461 = vmatpush1.bf16.msra.mxu0 %v385
        %462 = vmatprep.subr.bf16.mxu0 %v390
        %463 = vmatpush1.bf16.msra.mxu0 %v389
        %464 = vmatprep.subr.bf16.mxu0 %v394
        %465 = vmatpush1.bf16.msra.mxu0 %v393
        %466 = vmatprep.subr.bf16.mxu0 0
        %467 = vmatpush1.bf16.msra.mxu0 0
        %468 = vmatprep.subr.bf16.mxu0 0
        %469 = vmatpush1.bf16.msra.mxu0 0
        %470 = vmatprep.subr.bf16.mxu0 0
        %471 = vmatpush1.bf16.msra.mxu0 0
        %472 = vmatprep.subr.bf16.mxu0 0
        %473 = vmatpush1.bf16.msra.mxu0 0
        %474 = vmatprep.subr.bf16.mxu0 0
        %475 = vmatpush1.bf16.msra.mxu0 0
        %476 = vmatprep.subr.bf16.mxu0 0
        %477 = vmatpush1.bf16.msra.mxu0 0
        %478 = vmatprep.subr.bf16.mxu0 0
        %479 = vmatpush1.bf16.msra.mxu0 0
        %480 = vmatprep.subr.bf16.mxu0 0
        %481 = vmatpush1.bf16.msra.mxu0 0
        %482 = vmatprep.mubr.bf16.mxu0 0
        %483 = vmatmul.mubr.bf16.gmra.mrb[0].mxu0 %v235
        %v484 = vpop.f32.mrb[0].mxu0
        %v485 = vadd.f32 %v433, %v484
        %v486 = vpop.f32.mrb[0].mxu0
        %v487 = vadd.f32 %v437, %v486
        %v488 = vpop.f32.mrb[0].mxu0
        %v489 = vpop.f32.mrb[0].mxu0
        %490 = vdwg.mxu0
        %491 = vmatprep.subr.bf16.mxu0 %v368
        %492 = vmatpush1.bf16.msra.mxu0 %v367
        %493 = vmatprep.subr.bf16.mxu0 %v372
        %494 = vmatpush1.bf16.msra.mxu0 %v371
        %495 = vmatprep.subr.bf16.mxu0 %v376
        %496 = vmatpush1.bf16.msra.mxu0 %v375
        %497 = vmatprep.subr.bf16.mxu0 %v380
        %498 = vmatpush1.bf16.msra.mxu0 %v379
        %499 = vmatprep.subr.bf16.mxu0 %v384
        %500 = vmatpush1.bf16.msra.mxu0 %v383
        %501 = vmatprep.subr.bf16.mxu0 %v388
        %502 = vmatpush1.bf16.msra.mxu0 %v387
        %503 = vmatprep.subr.bf16.mxu0 %v392
        %504 = vmatpush1.bf16.msra.mxu0 %v391
        %505 = vmatprep.subr.bf16.mxu0 %v396
        %506 = vmatpush1.bf16.msra.mxu0 %v395
        %507 = vmatprep.subr.bf16.mxu0 0
        %508 = vmatpush1.bf16.msra.mxu0 0
        %509 = vmatprep.subr.bf16.mxu0 0
        %510 = vmatpush1.bf16.msra.mxu0 0
        %511 = vmatprep.subr.bf16.mxu0 0
        %512 = vmatpush1.bf16.msra.mxu0 0
        %513 = vmatprep.subr.bf16.mxu0 0
        %514 = vmatpush1.bf16.msra.mxu0 0
        %515 = vmatprep.subr.bf16.mxu0 0
        %516 = vmatpush1.bf16.msra.mxu0 0
        %517 = vmatprep.subr.bf16.mxu0 0
        %518 = vmatpush1.bf16.msra.mxu0 0
        %519 = vmatprep.subr.bf16.mxu0 0
        %520 = vmatpush1.bf16.msra.mxu0 0
        %521 = vmatprep.subr.bf16.mxu0 0
        %522 = vmatpush1.bf16.msra.mxu0 0
        %523 = vmatprep.mubr.bf16.mxu0 0
        %524 = vmatmul.mubr.bf16.gmra.mrb[0].mxu0 %v235
        %v525 = vpop.f32.mrb[0].mxu0
        %v526 = vadd.f32 %v441, %v525
        %v527 = vpop.f32.mrb[0].mxu0
        %v528 = vadd.f32 %v445, %v527
        %v529 = vpop.f32.mrb[0].mxu0
        %v530 = vpop.f32.mrb[0].mxu0
        %531 = vdwg.mxu0
        %v532 = vld [vmem:[#allocation2] sm:$0x1]
        %vm533 = vcmask 1040384
        %v534 = vsel %vm533, %v485, -inf
        %v535 = vsel %vm533, %v487, -inf
        %v536 = vsel %vm533, %v526, -inf
        %v537 = vsel %vm533, %v528, -inf
        %v538 = vmax.f32 %v534, %v535
        %v539 = vmax.f32 %v536, %v537
        %v540 = vmax.f32 %v538, %v539
        %541 = vmax.xlane.f32.xlu0 %v540
        %v542 = vpop.xlane.xlu0 %541
        %v543 = vmax.f32 %v532, %v542
        %v544 = vld [vmem:[#allocation3] sm:$0x1]
        %v545 = vsub.f32 %v532, %v543
        %v546 = vmul.f32 %v545, 1.442695
        %v547 = vpow.pop %v546
        %v548 = vmul.f32 %v544, %v547
        %550 = vset.pattern.permute.xlu0 0
        %551 = vperm.xlu0 %550, %v543
        %v552 = vpop.permute.xlu0 %551
        %v554 = vlaneseq
        %v555 = vshrl.u32 %v554, 7
        %v556 = vsub.s32 0, %v555
        %v557 = vrot.slane %v552, %v556
        %v558 = vsub.f32 %v485, %v557
        %v559 = vsub.f32 %v487, %v557
        %v560 = vsub.f32 %v526, %v557
        %v561 = vsub.f32 %v528, %v557
        %v562 = vmul.f32 %v558, 1.442695
        %v563 = vpow.pop %v562
        %v564 = vmul.f32 %v559, 1.442695
        %v565 = vpow.pop %v564
        %v566 = vmul.f32 %v560, 1.442695
        %v567 = vpow.pop %v566
        %v568 = vmul.f32 %v561, 1.442695
        %v569 = vpow.pop %v568
        %v570 = vsel %vm533, %v563, 0.0
        %v571 = vsel %vm533, %v565, 0.0
        %v572 = vadd.f32 %v570, %v571
        %v573 = vsel %vm533, %v567, 0.0
        %v574 = vadd.f32 %v572, %v573
        %v575 = vsel %vm533, %v569, 0.0
        %v576 = vadd.f32 %v574, %v575
        %577 = vadd.xlane.f32.xlu0 %v576
        %v578 = vpop.xlane.xlu0 %577
        %v579 = vadd.f32 %v548, %v578
        %vm580 = vcmask 0
        %581 = vst.msk [vmem:[#allocation3] sm:$0x1] %vm580, %v579
        %582 = vst.msk [vmem:[#allocation2] sm:$0x1] %vm580, %v543
        %v587 = vcombine.low %v485, %v487
        %v588 = vcombine.low %v526, %v528
        %v590 = vunpack.c.l.s4 1966171168
        %v591 = vunpack.c.0.s8 %v590
        %v592 = vlaneseq
        %v593 = vshrl.u32 %v592, 7
        %v594 = vsub.s32 %v591, %v593
        %v595 = vrot.slane %v587, %v594
        %v597 = vunpack.c.l.s4 1966171168
        %v598 = vunpack.c.0.s8 %v597
        %v599 = vlaneseq
        %v600 = vshrl.u32 %v599, 7
        %v601 = vsub.s32 %v598, %v600
        %v602 = vrot.slane %v588, %v601
        %v603 = vcombine.low %v595, %v602
        %v605 = vunpack.c.l.s4 1966171168
        %v606 = vunpack.c.0.s8 %v605
        %v607 = vlaneseq
        %v608 = vshrl.u32 %v607, 7
        %v609 = vsub.s32 %v606, %v608
        %v610 = vrot.slane %v603, %v609
        %s612 = smul.u32 %s19, 4
        %s613 = scalar_lea.vmem [#allocation10], %s612
        %v614 = vlaneseq
        %vm615 = vcmp.ge.s32.totalorder %v614, 0
        %vm616 = vcmp.lt.s32.totalorder %v614, 512
        %vm617 = vmand %vm615, %vm616
        %618 = vst.msk [vmem:[%s613] sm:$0xf] %vm617, %v610
        %p619 = scmp.eq.s32.totalorder %s19, 1
        // Predicated region
        $region49: #{tpu_custom_call.1} parent=31 // pred_check
          %p620 = pneg %p619
        $region50: #{tpu_custom_call.1} parent=31 // pred_check_branch
          %622 = sbr.rel (%p620) target = $region52
        $region51: #{tpu_custom_call.1} parent=31 // pred_region
          %v623 = vld [vmem:[#allocation2] sm:$0x1]
          %v624 = vld [vmem:[#allocation3] sm:$0x1]
          %v625 = vlog2.pop %v624
          %v626 = vmul.f32 %v625, 0.6931472
          %v627 = vadd.f32 %v623, %v626
          %v628 = vld [vmem:[#allocation10] sm:$0xf]
          %v629 = vld [vmem:[#allocation10 + $0x4] sm:$0xf]
          %631 = vset.pattern.permute.xlu0 0
          %632 = vperm.xlu0 %631, %v627
          %v633 = vpop.permute.xlu0 %632
          %v635 = vlaneseq
          %v636 = vshrl.u32 %v635, 7
          %v637 = vsub.s32 0, %v636
          %v638 = vrot.slane %v633, %v637
          %v639 = vsub.f32 %v628, %v638
          %v640 = vsub.f32 %v629, %v638
          %641 = vst.msk [vmem:[#allocation10] sm:$0xf] %vm617, %v639
          %642 = vst.msk [vmem:[#allocation10 + $0x4] sm:$0xf] %vm617, %v640
        $region52: #{tpu_custom_call.1} parent=31 // pred_fallthru
          _
        // Predicated region
        $region53: #{tpu_custom_call.1} parent=31 // pred_check
          %p643 = pneg %p105
        $region54: #{tpu_custom_call.1} parent=31 // pred_check_branch
          %645 = sbr.rel (%p643) target = $region56
        $region55: #{tpu_custom_call.1} parent=31 // pred_region
          %s647 = ssub.s32 128, 128
          %648 = vsyncadd [#allocation6], %s647
          %s649 = sshll.u32 [#allocation10], 4
          %s650 = int_to_ptr.vmem [resolvable:$true] %s649
          %655 = dma.vmem_to_hbm [thread:$0]  %s650, 128, %s3, [#allocation6], 64, 64, 4
        $region56: #{tpu_custom_call.1} parent=31 // pred_fallthru
          _
        // Predicated region
        $region57: #{tpu_custom_call.1} parent=31 // pred_check
          %p656 = pneg %p105
        $region58: #{tpu_custom_call.1} parent=31 // pred_check_branch
          %658 = sbr.rel (%p656) target = $region60
        $region59: #{tpu_custom_call.1} parent=31 // pred_region
          %659 = dma.done [#allocation6], 128
        $region60: #{tpu_custom_call.1} parent=31 // pred_fallthru
          _
      $region32: #{tpu_custom_call.1} parent=5 // pred_fallthru
        _
      %p660 = scmp.le.s32.totalorder 2, %s14
      // Predicated region
      $region61: #{tpu_custom_call.1} parent=5 // pred_check
        %p661 = pneg %p660
      $region62: #{tpu_custom_call.1} parent=5 // pred_check_branch
        %663 = sbr.rel (%p661) target = $region64
      $region63: #{tpu_custom_call.1} parent=5 // pred_region
        %s664 = ssub.s32 %s14, 2
      $region64: #{tpu_custom_call.1} parent=5 // pred_fallthru
        _
    $region6: #{tpu_custom_call.1} parent=1 // loop_footer
      %s18 = sadd.s32 1, %s14
    $region7: #{tpu_custom_call.1} parent=1 // loop_footer_branch
      %13 = sbr.rel target = $region3
    $region8: #{tpu_custom_call.1} parent=1 // loop_exit
      _
    %665 = vsyncpa [#allocation5], 1
    %s666 = scalar_lea.sflag [#allocation5], 1
    %667 = vsyncpa %s666, 1
    %668 = vsyncpa [#allocation8], 1
    %s669 = scalar_lea.sflag [#allocation8], 1
    %670 = vsyncpa %s669, 1
    %671 = vsyncpa [#allocation6], 1
    %s672 = scalar_lea.sflag [#allocation6], 1
    %673 = vsyncpa %s672, 1

</llo_original>
